<compile_context>
chip_gen: v5e
topology: v5e:2x2
jax: 0.10.0
libtpu: 0.0.40
codegen_flags: <defaults>
</compile_context>

<pallas_src>
import functools

import jax
import jax.numpy as jnp
import numpy as np
from jax import lax
from jax.experimental import pallas as pl
from jax.experimental.pallas import tpu as pltpu


_NEG_BIG = -1e30  # finite "-inf": avoids inf-inf NaNs in the online softmax


def _layernorm(x, gamma, beta, eps=1e-5):
    mu = jnp.mean(x, axis=-1, keepdims=True)
    var = jnp.mean((x - mu) ** 2, axis=-1, keepdims=True)
    return (x - mu) * lax.rsqrt(var + eps) * gamma + beta


def _gelu(x):
    # PyTorch nn.GELU() default is the exact (erf) formulation.
    return jax.nn.gelu(x, approximate=False)


# ---------------------------------------------------------------------------
# Kernel 1: LN1 + fused kqv projection.  Grid: (batch, seq tile), all parallel.
# Outputs bf16 k / q / v; softmax scale folded into q once.
# ---------------------------------------------------------------------------
def qkv_proj_kernel(x_ref, wkqv_ref, bkqv_ref, g1_ref, be1_ref,
                    k_ref, q_ref, v_ref, *, scale):
    x = x_ref[0]                                           # (TS, C) f32
    C = x.shape[-1]
    h = _layernorm(x, g1_ref[...], be1_ref[...])
    kqv = jnp.dot(h.astype(jnp.bfloat16), wkqv_ref[...],
                  preferred_element_type=jnp.float32) + bkqv_ref[...]
    # torch .chunk(3, dim=-1) order in the module is k, q, v
    k_ref[0] = kqv[:, 0:C].astype(jnp.bfloat16)
    q_ref[0] = (kqv[:, C:2 * C] * scale).astype(jnp.bfloat16)
    v_ref[0] = kqv[:, 2 * C:3 * C].astype(jnp.bfloat16)


# ---------------------------------------------------------------------------
# Kernel 2: flash causal attention (online softmax) fused with residual, LN2,
# FF (Linear->GELU->Linear->GELU) and the second residual.
# Grid: (batch, q tile, kv tile); kv is the reduction ("arbitrary") axis.
# ---------------------------------------------------------------------------
def flash_attn_ff_kernel(x_ref, q_ref, k_ref, v_ref,
                         g2_ref, be2_ref, w1_ref, bb1_ref, w2_ref, bb2_ref,
                         o_ref, acc_ref, m_ref, l_ref, *, num_heads):
    qi = pl.program_id(1)
    kv = pl.program_id(2)
    ts, C = q_ref.shape[1], q_ref.shape[2]
    D = C // num_heads

    @pl.when(kv == 0)
    def _init():
        m_ref[...] = jnp.full(m_ref.shape, _NEG_BIG, jnp.float32)
        l_ref[...] = jnp.zeros(l_ref.shape, jnp.float32)
        acc_ref[...] = jnp.zeros(acc_ref.shape, jnp.float32)

    # Causal tile skipping: tiles strictly above the diagonal contribute nothing
    # (their DMAs are also skipped because the index_map clamps at the diagonal).
    @pl.when(kv <= qi)
    def _update():
        q = q_ref[0]                                       # (TS, C) bf16, scaled
        k = k_ref[0]
        v = v_ref[0]

        # Mask only the diagonal tile (TQ == TK); off-diagonal tiles are fully
        # visible and get a zero bias.
        on_diag = kv == qi
        row = lax.broadcasted_iota(jnp.int32, (ts, ts), 0)
        col = lax.broadcasted_iota(jnp.int32, (ts, ts), 1)
        bias = jnp.where(jnp.logical_and(on_diag, col > row),
                         _NEG_BIG, 0.0).astype(jnp.float32)

        for h in range(num_heads):                         # static unroll (small H)
            sl = slice(h * D, (h + 1) * D)
            qh, kh, vh = q[:, sl], k[:, sl], v[:, sl]
            # q @ k.T via rhs-contraction: no materialized transpose.
            s = lax.dot_general(qh, kh, (((1,), (1,)), ((), ())),
                                preferred_element_type=jnp.float32) + bias
            m_p = m_ref[:, h * D:h * D + 1]                # (TS, 1)
            l_p = l_ref[:, h * D:h * D + 1]
            m_n = jnp.maximum(m_p, jnp.max(s, axis=-1, keepdims=True))
            alpha = jnp.exp(m_p - m_n)
            e = jnp.exp(s - m_n)                           # unnormalized probs
            l_n = alpha * l_p + jnp.sum(e, axis=-1, keepdims=True)
            pv = jnp.dot(e.astype(jnp.bfloat16), vh,
                         preferred_element_type=jnp.float32)
            acc_ref[:, sl] = alpha * acc_ref[:, sl] + pv   # normalize at finalize
            # store m/l broadcast across the head's lanes -> dense finalize
            m_ref[:, sl] = jnp.broadcast_to(m_n, (ts, D))
            l_ref[:, sl] = jnp.broadcast_to(l_n, (ts, D))

    # Last contributing kv tile for this query tile: finalize softmax, then the
    # residual + LN2 + FF (+GELU after BOTH linears, as in the PyTorch module)
    # + residual, one lane-dense (TS, C) store.
    @pl.when(kv == qi)
    def _finalize():
        attn = acc_ref[...] * pl.reciprocal(l_ref[...], approx=True)
        x1 = x_ref[0] + attn
        h2 = _layernorm(x1, g2_ref[...], be2_ref[...])
        a = _gelu(jnp.dot(h2.astype(jnp.bfloat16), w1_ref[...],
                          preferred_element_type=jnp.float32) + bb1_ref[...])
        f = _gelu(jnp.dot(a.astype(jnp.bfloat16), w2_ref[...],
                          preferred_element_type=jnp.float32) + bb2_ref[...])
        o_ref[0] = x1 + f


# ---------------------------------------------------------------------------
# Wrapper
# ---------------------------------------------------------------------------
def _pick_tile(T):
    # >=256-row query tiles when possible (MXU depth on v6e/v7x); fall back to
    # the largest power-of-two tile dividing T, else T itself.
    for ts in (256, 128, 64, 32, 16, 8):
        if T % ts == 0:
            return ts
    return T


def _chip_vmem_bytes():
    try:
        cap = getattr(pltpu.get_tpu_info(), "vmem_capacity_bytes", None)
        if cap:
            return int(cap)
    except Exception:
        pass
    return 64 * 2 ** 20          # conservative default: v7x has 64 MiB / TensorCore


def _vmem_limit(est_bytes):
    cap = _chip_vmem_bytes()
    ceiling = (cap * 13) // 16   # ~81% of physical: headroom for compiler scratch
    return int(min(max(2 * est_bytes, 16 * 2 ** 20), ceiling))


def attention_block(x, params, num_heads):
    B, T, C = x.shape
    if C % num_heads != 0:
        raise ValueError("dim must be divisible by num_heads")
    if C % 128 != 0:
        raise ValueError("dim must be a multiple of 128 (lane-dense head tiles)")
    wkqv, bkqv, g1, be1, g2, be2, w1, bb1, w2, bb2 = params
    scale = (C // num_heads) ** (-0.5)

    TS = _pick_tile(T)
    nt = T // TS

    # bf16 weight matrices (native MXU rate, half the VMEM); LN params / biases f32.
    wkqv_bf = wkqv.astype(jnp.bfloat16)
    w1_bf = w1.astype(jnp.bfloat16)
    w2_bf = w2.astype(jnp.bfloat16)

    # Full-array weights: resident in VMEM, single copy (no per-step pipelining).
    resident = pl.BlockSpec(memory_space=pltpu.MemorySpace.VMEM)

    f32b, bf16b = 4, 2
    est_proj = (2 * TS * C * f32b + 6 * TS * C * bf16b
                + 3 * C * C * bf16b + 5 * C * f32b
                + 8 * TS * C * f32b)                         # LN / f32 kqv temps
    est_attn = (4 * TS * C * f32b + 6 * TS * C * bf16b
                + 8 * C * C * bf16b + 7 * C * f32b           # FF/LN2 weights
                + 3 * TS * C * f32b                          # acc / m / l scratch
                + 4 * TS * TS * f32b                         # score / exp temps
                + 8 * TS * C * f32b + 4 * TS * C * f32b)     # FF hidden / misc

    # ---- kernel 1: LN1 + kqv projection -> bf16 k, q (pre-scaled), v ---------
    seq_blk = pl.BlockSpec((1, TS, C), lambda b, t: (b, t, 0))
    k_arr, q_arr, v_arr = pl.pallas_call(
        functools.partial(qkv_proj_kernel, scale=scale),
        out_shape=[jax.ShapeDtypeStruct((B, T, C), jnp.bfloat16)] * 3,
        grid=(B, nt),
        in_specs=[seq_blk, resident, resident, resident, resident],
        out_specs=[pl.BlockSpec((1, TS, C), lambda b, t: (b, t, 0))] * 3,
        compiler_params=pltpu.CompilerParams(
            dimension_semantics=("parallel", "parallel"),
            vmem_limit_bytes=_vmem_limit(est_proj)),
    )(x, wkqv_bf, bkqv, g1, be1)

    # ---- kernel 2: flash attention + residual + LN2 + FF + residual ----------
    q_blk = pl.BlockSpec((1, TS, C), lambda b, qi, kv: (b, qi, 0))
    # causal clamp: kv tiles above the diagonal map to the diagonal block, so
    # their DMA is skipped (unchanged block index) and compute is pl.when-gated.
    kv_blk = pl.BlockSpec((1, TS, C),
                          lambda b, qi, kv: (b, jnp.minimum(kv, qi), 0))

    out = pl.pallas_call(
        functools.partial(flash_attn_ff_kernel, num_heads=num_heads),
        out_shape=jax.ShapeDtypeStruct((B, T, C), jnp.float32),
        grid=(B, nt, nt),
        in_specs=[q_blk,                # x (residual input)
                  q_blk,                # q
                  kv_blk,               # k
                  kv_blk,               # v
                  resident, resident,   # ln2 gamma / beta
                  resident, resident,   # w1 / b1
                  resident, resident],  # w2 / b2
        out_specs=pl.BlockSpec((1, TS, C), lambda b, qi, kv: (b, qi, 0)),
        scratch_shapes=[pltpu.VMEM((TS, C), jnp.float32),   # acc
                        pltpu.VMEM((TS, C), jnp.float32),   # running max (per-head lanes)
                        pltpu.VMEM((TS, C), jnp.float32)],  # running sum (per-head lanes)
        compiler_params=pltpu.CompilerParams(
            dimension_semantics=("parallel", "parallel", "arbitrary"),
            vmem_limit_bytes=_vmem_limit(est_attn)),
    )(x, q_arr, k_arr, v_arr, g2, be2, w1_bf, bb1, w2_bf, bb2)
    return out


# ---------------------------------------------------------------------------
# Pure-JAX f32 reference mirroring the PyTorch forward.
# ---------------------------------------------------------------------------
def reference(x, params, num_heads):
    wkqv, bkqv, g1, be1, g2, be2, w1, bb1, w2, bb2 = params
    B, T, C = x.shape
    D = C // num_heads
    scale = D ** (-0.5)

    h = _layernorm(x, g1[0], be1[0])
    kqv = h @ wkqv + bkqv[0]
    k, q, v = jnp.split(kqv, 3, axis=-1)

    def to_heads(t):  # b t (h d) -> b h t d
        return t.reshape(B, T, num_heads, D).transpose(0, 2, 1, 3)

    k, q, v = to_heads(k), to_heads(q), to_heads(v)
    s = jnp.einsum("bhtd,bhsd->bhts", q, k) * scale
    mask = jnp.tril(jnp.ones((T, T)))
    s = jnp.where(mask == 0, -jnp.inf, s)
    p = jax.nn.softmax(s, axis=-1)
    o = jnp.einsum("bhts,bhsd->bhtd", p, v)
    o = o.transpose(0, 2, 1, 3).reshape(B, T, C)
    x1 = x + o

    h2 = _layernorm(x1, g2[0], be2[0])
    a = _gelu(h2 @ w1 + bb1[0])
    f = _gelu(a @ w2 + bb2[0])
    return x1 + f


def init_params(key, dim):
    ks = jax.random.split(key, 8)
    wkqv = 0.02 * jax.random.normal(ks[0], (dim, 3 * dim), jnp.float32)
    bkqv = 0.02 * jax.random.normal(ks[1], (1, 3 * dim), jnp.float32)
    g1 = 1.0 + 0.02 * jax.random.normal(ks[2], (1, dim), jnp.float32)
    be1 = 0.02 * jax.random.normal(ks[3], (1, dim), jnp.float32)
    g2 = 1.0 + 0.02 * jax.random.normal(ks[4], (1, dim), jnp.float32)
    be2 = 0.02 * jax.random.normal(ks[5], (1, dim), jnp.float32)
    w1 = 0.02 * jax.random.normal(ks[6], (dim, 4 * dim), jnp.float32)
    bb1 = jnp.zeros((1, 4 * dim), jnp.float32)
    w2 = 0.02 * jax.random.normal(ks[7], (4 * dim, dim), jnp.float32)
    bb2 = jnp.zeros((1, dim), jnp.float32)
    return (wkqv, bkqv, g1, be1, g2, be2, w1, bb1, w2, bb2)


if __name__ == "__main__":
    # batch, seq_len, dim, num_heads -- C=128 keeps lanes dense, T multiple of 8
    B, T, C, H = 2, 16, 128, 4
    key = jax.random.PRNGKey(0)
    kx, kp = jax.random.split(key)
    x = jax.random.normal(kx, (B, T, C), jnp.float32)
    params = init_params(kp, C)

    out = jax.block_until_ready(attention_block(x, params, num_heads=H))

    ref = reference(x, params, num_heads=H)
    np.testing.assert_allclose(np.asarray(out), np.asarray(ref),
                               atol=2e-2, rtol=2e-2)

    print("KERNEL_OK")
</pallas_src>

<mosaic_0001>
module attributes {stable_mosaic.version = 11 : i64} {
  func.func @qkv_proj_kernel(%arg0: i32, %arg1: i32, %arg2: memref<1x16x128xf32, #tpu.memory_space<vmem>>, %arg3: memref<128x384xbf16, #tpu.memory_space<vmem>>, %arg4: memref<1x384xf32, #tpu.memory_space<vmem>>, %arg5: memref<1x128xf32, #tpu.memory_space<vmem>>, %arg6: memref<1x128xf32, #tpu.memory_space<vmem>>, %arg7: memref<1x16x128xbf16, #tpu.memory_space<vmem>>, %arg8: memref<1x16x128xbf16, #tpu.memory_space<vmem>>, %arg9: memref<1x16x128xbf16, #tpu.memory_space<vmem>>) attributes {dimension_semantics = [#tpu.dimension_semantics<parallel>, #tpu.dimension_semantics<parallel>], iteration_bounds = array<i64: 2, 1>, scalar_prefetch = 0 : i64, scratch_operands = 0 : i64, tpu.core_type = #tpu.core_type<tc>, window_params = [{transform_indices = @transform_0, window_bounds = array<i64: 1, 16, 128>}, {pipeline_mode = #tpu.pipeline_mode<synchronous>, transform_indices = @transform_1, window_bounds = array<i64: 128, 384>}, {pipeline_mode = #tpu.pipeline_mode<synchronous>, transform_indices = @transform_2, window_bounds = array<i64: 1, 384>}, {pipeline_mode = #tpu.pipeline_mode<synchronous>, transform_indices = @transform_3, window_bounds = array<i64: 1, 128>}, {pipeline_mode = #tpu.pipeline_mode<synchronous>, transform_indices = @transform_4, window_bounds = array<i64: 1, 128>}, {transform_indices = @transform_5, window_bounds = array<i64: 1, 16, 128>}, {transform_indices = @transform_6, window_bounds = array<i64: 1, 16, 128>}, {transform_indices = @transform_7, window_bounds = array<i64: 1, 16, 128>}]} {
    %c0 = arith.constant 0 : index
    %c0_0 = arith.constant 0 : index
    %c0_1 = arith.constant 0 : index
    %0 = vector.load %arg2[%c0, %c0_0, %c0_1] : memref<1x16x128xf32, #tpu.memory_space<vmem>>, vector<1x16x128xf32>
    %1 = vector.shape_cast %0 : vector<1x16x128xf32> to vector<16x128xf32>
    %c0_2 = arith.constant 0 : index
    %c0_3 = arith.constant 0 : index
    %2 = vector.load %arg5[%c0_2, %c0_3] : memref<1x128xf32, #tpu.memory_space<vmem>>, vector<1x128xf32>
    %c0_4 = arith.constant 0 : index
    %c0_5 = arith.constant 0 : index
    %3 = vector.load %arg6[%c0_4, %c0_5] : memref<1x128xf32, #tpu.memory_space<vmem>>, vector<1x128xf32>
    %cst = arith.constant dense<0.000000e+00> : vector<16xf32>
    %4 = vector.multi_reduction <add>, %1, %cst [1] : vector<16x128xf32> to vector<16xf32>
    %5 = vector.shape_cast %4 : vector<16xf32> to vector<16x1xf32>
    %cst_6 = arith.constant 1.280000e+02 : f32
    %6 = vector.broadcast %cst_6 : f32 to vector<16x1xf32>
    %7 = arith.divf %5, %6 : vector<16x1xf32>
    %8 = vector.broadcast %7 : vector<16x1xf32> to vector<16x128xf32>
    %9 = arith.subf %1, %8 : vector<16x128xf32>
    %10 = arith.mulf %9, %9 : vector<16x128xf32>
    %cst_7 = arith.constant dense<0.000000e+00> : vector<16xf32>
    %11 = vector.multi_reduction <add>, %10, %cst_7 [1] : vector<16x128xf32> to vector<16xf32>
    %12 = vector.shape_cast %11 : vector<16xf32> to vector<16x1xf32>
    %cst_8 = arith.constant 1.280000e+02 : f32
    %13 = vector.broadcast %cst_8 : f32 to vector<16x1xf32>
    %14 = arith.divf %12, %13 : vector<16x1xf32>
    %15 = vector.broadcast %7 : vector<16x1xf32> to vector<16x128xf32>
    %16 = arith.subf %1, %15 : vector<16x128xf32>
    %cst_9 = arith.constant 9.99999974E-6 : f32
    %17 = vector.broadcast %cst_9 : f32 to vector<16x1xf32>
    %18 = arith.addf %14, %17 : vector<16x1xf32>
    %19 = math.rsqrt %18 : vector<16x1xf32>
    %20 = vector.broadcast %19 : vector<16x1xf32> to vector<16x128xf32>
    %21 = arith.mulf %16, %20 : vector<16x128xf32>
    %22 = vector.broadcast %2 : vector<1x128xf32> to vector<16x128xf32>
    %23 = arith.mulf %21, %22 : vector<16x128xf32>
    %24 = vector.broadcast %3 : vector<1x128xf32> to vector<16x128xf32>
    %25 = arith.addf %23, %24 : vector<16x128xf32>
    %26 = arith.truncf %25 : vector<16x128xf32> to vector<16x128xbf16>
    %c0_10 = arith.constant 0 : index
    %c0_11 = arith.constant 0 : index
    %27 = vector.load %arg3[%c0_10, %c0_11] : memref<128x384xbf16, #tpu.memory_space<vmem>>, vector<128x384xbf16>
    %cst_12 = arith.constant dense<0.000000e+00> : vector<16x384xf32>
    %28 = tpu.matmul %26, %27, %cst_12 {dimension_numbers = #tpu.dot_dimension_numbers<[1], [0], [0], [1], [0, 0, 1, 1], [], []>} : vector<16x128xbf16>, vector<128x384xbf16>, vector<16x384xf32> -> vector<16x384xf32>
    %c0_13 = arith.constant 0 : index
    %c0_14 = arith.constant 0 : index
    %29 = vector.load %arg4[%c0_13, %c0_14] : memref<1x384xf32, #tpu.memory_space<vmem>>, vector<1x384xf32>
    %30 = vector.broadcast %29 : vector<1x384xf32> to vector<16x384xf32>
    %31 = arith.addf %28, %30 : vector<16x384xf32>
    %32 = vector.extract_strided_slice %31 {offsets = [0, 0], sizes = [16, 128], strides = [1, 1]} : vector<16x384xf32> to vector<16x128xf32>
    %33 = arith.truncf %32 : vector<16x128xf32> to vector<16x128xbf16>
    %c0_15 = arith.constant 0 : index
    %c0_16 = arith.constant 0 : index
    %c0_17 = arith.constant 0 : index
    %34 = vector.load %arg7[%c0_15, %c0_16, %c0_17] : memref<1x16x128xbf16, #tpu.memory_space<vmem>>, vector<1x16x128xbf16>
    %35 = vector.shape_cast %34 : vector<1x16x128xbf16> to vector<16x128xbf16>
    %36 = vector.shape_cast %33 : vector<16x128xbf16> to vector<1x16x128xbf16>
    tpu.vector_store %arg7[%c0_15, %c0_16, %c0_17], %36 {strides = array<i32>} : memref<1x16x128xbf16, #tpu.memory_space<vmem>>, vector<1x16x128xbf16>,
    %37 = vector.extract_strided_slice %31 {offsets = [0, 128], sizes = [16, 128], strides = [1, 1]} : vector<16x384xf32> to vector<16x128xf32>
    %cst_18 = arith.constant 0.176776692 : f32
    %38 = vector.broadcast %cst_18 : f32 to vector<16x128xf32>
    %39 = arith.mulf %37, %38 : vector<16x128xf32>
    %40 = arith.truncf %39 : vector<16x128xf32> to vector<16x128xbf16>
    %c0_19 = arith.constant 0 : index
    %c0_20 = arith.constant 0 : index
    %c0_21 = arith.constant 0 : index
    %41 = vector.load %arg8[%c0_19, %c0_20, %c0_21] : memref<1x16x128xbf16, #tpu.memory_space<vmem>>, vector<1x16x128xbf16>
    %42 = vector.shape_cast %41 : vector<1x16x128xbf16> to vector<16x128xbf16>
    %43 = vector.shape_cast %40 : vector<16x128xbf16> to vector<1x16x128xbf16>
    tpu.vector_store %arg8[%c0_19, %c0_20, %c0_21], %43 {strides = array<i32>} : memref<1x16x128xbf16, #tpu.memory_space<vmem>>, vector<1x16x128xbf16>,
    %44 = vector.extract_strided_slice %31 {offsets = [0, 256], sizes = [16, 128], strides = [1, 1]} : vector<16x384xf32> to vector<16x128xf32>
    %45 = arith.truncf %44 : vector<16x128xf32> to vector<16x128xbf16>
    %c0_22 = arith.constant 0 : index
    %c0_23 = arith.constant 0 : index
    %c0_24 = arith.constant 0 : index
    %46 = vector.load %arg9[%c0_22, %c0_23, %c0_24] : memref<1x16x128xbf16, #tpu.memory_space<vmem>>, vector<1x16x128xbf16>
    %47 = vector.shape_cast %46 : vector<1x16x128xbf16> to vector<16x128xbf16>
    %48 = vector.shape_cast %45 : vector<16x128xbf16> to vector<1x16x128xbf16>
    tpu.vector_store %arg9[%c0_22, %c0_23, %c0_24], %48 {strides = array<i32>} : memref<1x16x128xbf16, #tpu.memory_space<vmem>>, vector<1x16x128xbf16>,
    return
  }
  func.func @transform_0(%arg0: i32, %arg1: i32) -> (i32, i32, i32) {
    %c0_i32 = arith.constant 0 : i32
    %c0_i32_0 = arith.constant 0 : i32
    return %arg0, %arg1, %c0_i32 : i32, i32, i32
  }
  func.func @transform_1(%arg0: i32, %arg1: i32) -> (i32, i32) {
    %c0_i32 = arith.constant 0 : i32
    %c0_i32_0 = arith.constant 0 : i32
    %c0_i32_1 = arith.constant 0 : i32
    return %c0_i32, %c0_i32_0 : i32, i32
  }
  func.func @transform_2(%arg0: i32, %arg1: i32) -> (i32, i32) {
    %c0_i32 = arith.constant 0 : i32
    %c0_i32_0 = arith.constant 0 : i32
    %c0_i32_1 = arith.constant 0 : i32
    return %c0_i32, %c0_i32_0 : i32, i32
  }
  func.func @transform_3(%arg0: i32, %arg1: i32) -> (i32, i32) {
    %c0_i32 = arith.constant 0 : i32
    %c0_i32_0 = arith.constant 0 : i32
    %c0_i32_1 = arith.constant 0 : i32
    return %c0_i32, %c0_i32_0 : i32, i32
  }
  func.func @transform_4(%arg0: i32, %arg1: i32) -> (i32, i32) {
    %c0_i32 = arith.constant 0 : i32
    %c0_i32_0 = arith.constant 0 : i32
    %c0_i32_1 = arith.constant 0 : i32
    return %c0_i32, %c0_i32_0 : i32, i32
  }
  func.func @transform_5(%arg0: i32, %arg1: i32) -> (i32, i32, i32) {
    %c0_i32 = arith.constant 0 : i32
    %c0_i32_0 = arith.constant 0 : i32
    return %arg0, %arg1, %c0_i32 : i32, i32, i32
  }
  func.func @transform_6(%arg0: i32, %arg1: i32) -> (i32, i32, i32) {
    %c0_i32 = arith.constant 0 : i32
    %c0_i32_0 = arith.constant 0 : i32
    return %arg0, %arg1, %c0_i32 : i32, i32, i32
  }
  func.func @transform_7(%arg0: i32, %arg1: i32) -> (i32, i32, i32) {
    %c0_i32 = arith.constant 0 : i32
    %c0_i32_0 = arith.constant 0 : i32
    return %arg0, %arg1, %c0_i32 : i32, i32, i32
  }
}

</mosaic_0001>

<llo_original>
// kernel: tpu_custom_call.1
$region0: #{tpu_custom_call.1}
  #allocation0 [shape = 'u32[]', space=smem, size = 0x4, offset = 0x4, fixed_abs, tag = 'smem constant byte address 0x4 - core index']
  #allocation1 [shape = 'u32[72,128]{1,0:T(1,128)}', space=vmem, size = 0x9000, scoped, tag = 'internal scratch']
  %s0 = inlined_call_operand.hbm [shape: f32[2,16,128], index: 0, kind: input, shape index: {}]
  %s1 = inlined_call_operand.hbm [shape: bf16[128,384], index: 1, kind: input, shape index: {}]
  %s2 = inlined_call_operand.hbm [shape: f32[1,384], index: 2, kind: input, shape index: {}]
  %s3 = inlined_call_operand.vmem [shape: f32[1,128], index: 3, kind: input, shape index: {}]
  %s4 = inlined_call_operand.vmem [shape: f32[1,128], index: 4, kind: input, shape index: {}]
  %s5 = inlined_call_operand.hbm [shape: bf16[2,16,128], index: 5, kind: output, shape index: {0}]
  %s6 = inlined_call_operand.hbm [shape: bf16[2,16,128], index: 6, kind: output, shape index: {1}]
  %s7 = inlined_call_operand.hbm [shape: bf16[2,16,128], index: 7, kind: output, shape index: {2}]
  %8 = xla_tuple %s5, %s6, %s7
  %s9 = sld [smem:[#allocation0]]
  $region81: #{tpu_custom_call.1} parent=0
    _
  %s11 = ssub.s32 1, %s9
  %s12 = scalar_select 0, %s11, %s9
  $region1: #{tpu_custom_call.1} parent=0
    #allocation2 [shape = 'u8[16384]{0}', space=vmem, size = 0x4000, scoped, tag = 'input window, operand 0']
    #allocation3 [shape = 's32[2]{0}', space=sflag, size = 0x8, scoped, tag = 'scoped memory for tpu_custom_call.1']
    #allocation4 [shape = 's32[2]{0}', space=sflag, size = 0x8, scoped, tag = 'scoped memory for tpu_custom_call.1']
    #allocation5 [shape = 'u8[98304]{0}', space=vmem, size = 0x18000, scoped, tag = 'input window, operand 1, single buffered']
    #allocation6 [shape = 's32[1]{0}', space=sflag, size = 0x4, scoped, tag = 'scoped memory for tpu_custom_call.1']
    #allocation7 [shape = 'u8[1536]{0}', space=vmem, size = 0x800, scoped, tag = 'input window, operand 2, single buffered']
    #allocation8 [shape = 'u8[8192]{0}', space=vmem, size = 0x2000, scoped, tag = 'output window, operand 0']
    #allocation9 [shape = 'u8[8192]{0}', space=vmem, size = 0x2000, scoped, tag = 'output window, operand 1']
    #allocation10 [shape = 's32[2]{0}', space=sflag, size = 0x8, scoped, tag = 'scoped memory for tpu_custom_call.1']
    #allocation11 [shape = 'u8[8192]{0}', space=vmem, size = 0x2000, scoped, tag = 'output window, operand 2']
    %13 = vsyncpa [#allocation3], 0
    %s14 = scalar_lea.sflag [#allocation3], 1
    %15 = vsyncpa %s14, 0
    %16 = vsyncpa [#allocation6], 0
    %17 = vsyncpa [#allocation4], 0
    %s18 = scalar_lea.sflag [#allocation4], 1
    %19 = vsyncpa %s18, 0
    %20 = vsyncpa [#allocation10], 0
    %s21 = scalar_lea.sflag [#allocation10], 1
    %22 = vsyncpa %s21, 0
    loop: start=0, step=1, limit=4
    $region2: #{tpu_custom_call.1} parent=1 // loop_pre_header
      _
    $region3: #{tpu_custom_call.1} parent=1 // loop_header
      %s24 = sphi 0, %s28
      %p25 = scmp.ge.s32.totalorder %s24, 4
      %s31 = sphi 0, %s43
      %s32 = sphi 0, %s39
      %s33 = sphi 0, %s31
      %s34 = sphi 0, %s32
      %s35 = sphi 0, %s33
      %s36 = sphi 0, %s34
      %s48 = sphi 0, %s50
      %s51 = sphi 0, %s48
      %s52 = sphi 0, %s51
      %s68 = sphi 0, %s52
      %s72 = sphi 0, %s72
      %s74 = sphi 0, %s72
      %s75 = sphi 0, %s74
      %s89 = sphi 0, %s75
      %s93 = sphi 0, %s93
      %s95 = sphi 0, %s93
      %s96 = sphi 0, %s95
      %s110 = sphi 0, %s96
      %s114 = sphi 0, %s114
      %s116 = sphi 0, %s114
      %s117 = sphi 0, %s116
      %s131 = sphi 0, %s117
      %s135 = sphi 0, %s135
      %s137 = sphi 0, %s135
      %s138 = sphi 0, %s137
      %s152 = sphi 0, %s138
      %s160 = sphi 0, %s162
      %s163 = sphi 0, %s160
      %s164 = sphi 0, %s163
      %s180 = sphi 0, %s164
      %s188 = sphi 0, %s190
      %s191 = sphi 0, %s188
      %s192 = sphi 0, %s191
      %s208 = sphi 0, %s192
      %s216 = sphi 0, %s218
      %s219 = sphi 0, %s216
      %s220 = sphi 0, %s219
      %s236 = sphi 0, %s220
    $region4: #{tpu_custom_call.1} parent=1 // loop_header_branch
      %27 = sbr.rel (%p25) target = $region8
    $region5: #{tpu_custom_call.1} parent=1 // loop_body
      %s29 = ssub.s32 %s24, 1
      %s30 = ssub.s32 %s24, 2
      %s37 = sadd.s32 1, %s32
      %p38 = scmp.ge.s32.totalorder %s37, 1
      %s39 = scalar_select %p38, 0, %s37
      %s40 = sadd.s32 1, %s31
      %s41 = scalar_select %p38, %s40, %s31
      %p42 = scmp.ge.s32.totalorder %s41, 2
      %s43 = scalar_select %p42, 0, %s41
      %s44 = ssub.s32 %s31, %s43
      %s45 = ssub.s32 %s32, %s39
      %s46 = sor.u32 %s44, %s45
      %p47 = scmp.eq.s32.totalorder %s46, 0
      %s49 = sadd.s32 %s48, 1
      %s50 = scalar_select %p47, %s48, %s49
      %p53 = pneg %p47
      %p54 = scmp.eq.s32.totalorder %s24, 1
      %p55 = por %p53, %p54
      %p56 = scmp.ne.s32.totalorder %s48, %s51
      %p57 = scmp.eq.s32.totalorder %s24, 0
      %p58 = por %p56, %p57
      %p59 = scmp.ne.s32.totalorder %s48, %s51
      %p60 = scmp.eq.s32.totalorder %s29, 1
      %p61 = por %p59, %p60
      %p62 = scmp.ne.s32.totalorder %s51, %s52
      %p63 = scmp.eq.s32.totalorder %s29, 0
      %p64 = por %p62, %p63
      %p65 = scmp.ne.s32.totalorder %s51, %s52
      %p66 = scmp.eq.s32.totalorder %s30, 1
      %p67 = por %p65, %p66
      %p69 = scmp.ne.s32.totalorder %s52, %s68
      %p70 = scmp.eq.s32.totalorder %s30, 0
      %p71 = por %p69, %p70
      %s73 = sadd.s32 %s72, 1
      %p76 = scmp.eq.s32.totalorder %s24, 1
      %p77 = scmp.ne.s32.totalorder %s72, %s74
      %p78 = scmp.eq.s32.totalorder %s24, 0
      %p79 = por %p77, %p78
      %p80 = scmp.ne.s32.totalorder %s72, %s74
      %p81 = scmp.eq.s32.totalorder %s29, 1
      %p82 = por %p80, %p81
      %p83 = scmp.ne.s32.totalorder %s74, %s75
      %p84 = scmp.eq.s32.totalorder %s29, 0
      %p85 = por %p83, %p84
      %p86 = scmp.ne.s32.totalorder %s74, %s75
      %p87 = scmp.eq.s32.totalorder %s30, 1
      %p88 = por %p86, %p87
      %p90 = scmp.ne.s32.totalorder %s75, %s89
      %p91 = scmp.eq.s32.totalorder %s30, 0
      %p92 = por %p90, %p91
      %s94 = sadd.s32 %s93, 1
      %p97 = scmp.eq.s32.totalorder %s24, 1
      %p98 = scmp.ne.s32.totalorder %s93, %s95
      %p99 = scmp.eq.s32.totalorder %s24, 0
      %p100 = por %p98, %p99
      %p101 = scmp.ne.s32.totalorder %s93, %s95
      %p102 = scmp.eq.s32.totalorder %s29, 1
      %p103 = por %p101, %p102
      %p104 = scmp.ne.s32.totalorder %s95, %s96
      %p105 = scmp.eq.s32.totalorder %s29, 0
      %p106 = por %p104, %p105
      %p107 = scmp.ne.s32.totalorder %s95, %s96
      %p108 = scmp.eq.s32.totalorder %s30, 1
      %p109 = por %p107, %p108
      %p111 = scmp.ne.s32.totalorder %s96, %s110
      %p112 = scmp.eq.s32.totalorder %s30, 0
      %p113 = por %p111, %p112
      %s115 = sadd.s32 %s114, 1
      %p118 = scmp.eq.s32.totalorder %s24, 1
      %p119 = scmp.ne.s32.totalorder %s114, %s116
      %p120 = scmp.eq.s32.totalorder %s24, 0
      %p121 = por %p119, %p120
      %p122 = scmp.ne.s32.totalorder %s114, %s116
      %p123 = scmp.eq.s32.totalorder %s29, 1
      %p124 = por %p122, %p123
      %p125 = scmp.ne.s32.totalorder %s116, %s117
      %p126 = scmp.eq.s32.totalorder %s29, 0
      %p127 = por %p125, %p126
      %p128 = scmp.ne.s32.totalorder %s116, %s117
      %p129 = scmp.eq.s32.totalorder %s30, 1
      %p130 = por %p128, %p129
      %p132 = scmp.ne.s32.totalorder %s117, %s131
      %p133 = scmp.eq.s32.totalorder %s30, 0
      %p134 = por %p132, %p133
      %s136 = sadd.s32 %s135, 1
      %p139 = scmp.eq.s32.totalorder %s24, 1
      %p140 = scmp.ne.s32.totalorder %s135, %s137
      %p141 = scmp.eq.s32.totalorder %s24, 0
      %p142 = por %p140, %p141
      %p143 = scmp.ne.s32.totalorder %s135, %s137
      %p144 = scmp.eq.s32.totalorder %s29, 1
      %p145 = por %p143, %p144
      %p146 = scmp.ne.s32.totalorder %s137, %s138
      %p147 = scmp.eq.s32.totalorder %s29, 0
      %p148 = por %p146, %p147
      %p149 = scmp.ne.s32.totalorder %s137, %s138
      %p150 = scmp.eq.s32.totalorder %s30, 1
      %p151 = por %p149, %p150
      %p153 = scmp.ne.s32.totalorder %s138, %s152
      %p154 = scmp.eq.s32.totalorder %s30, 0
      %p155 = por %p153, %p154
      %s156 = ssub.s32 %s31, %s43
      %s157 = ssub.s32 %s32, %s39
      %s158 = sor.u32 %s156, %s157
      %p159 = scmp.eq.s32.totalorder %s158, 0
      %s161 = sadd.s32 %s160, 1
      %s162 = scalar_select %p159, %s160, %s161
      %p165 = pneg %p159
      %p166 = scmp.eq.s32.totalorder %s24, 1
      %p167 = por %p165, %p166
      %p168 = scmp.ne.s32.totalorder %s160, %s163
      %p169 = scmp.eq.s32.totalorder %s24, 0
      %p170 = por %p168, %p169
      %p171 = scmp.ne.s32.totalorder %s160, %s163
      %p172 = scmp.eq.s32.totalorder %s29, 1
      %p173 = por %p171, %p172
      %p174 = scmp.ne.s32.totalorder %s163, %s164
      %p175 = scmp.eq.s32.totalorder %s29, 0
      %p176 = por %p174, %p175
      %p177 = scmp.ne.s32.totalorder %s163, %s164
      %p178 = scmp.eq.s32.totalorder %s30, 1
      %p179 = por %p177, %p178
      %p181 = scmp.ne.s32.totalorder %s164, %s180
      %p182 = scmp.eq.s32.totalorder %s30, 0
      %p183 = por %p181, %p182
      %s184 = ssub.s32 %s31, %s43
      %s185 = ssub.s32 %s32, %s39
      %s186 = sor.u32 %s184, %s185
      %p187 = scmp.eq.s32.totalorder %s186, 0
      %s189 = sadd.s32 %s188, 1
      %s190 = scalar_select %p187, %s188, %s189
      %p193 = pneg %p187
      %p194 = scmp.eq.s32.totalorder %s24, 1
      %p195 = por %p193, %p194
      %p196 = scmp.ne.s32.totalorder %s188, %s191
      %p197 = scmp.eq.s32.totalorder %s24, 0
      %p198 = por %p196, %p197
      %p199 = scmp.ne.s32.totalorder %s188, %s191
      %p200 = scmp.eq.s32.totalorder %s29, 1
      %p201 = por %p199, %p200
      %p202 = scmp.ne.s32.totalorder %s191, %s192
      %p203 = scmp.eq.s32.totalorder %s29, 0
      %p204 = por %p202, %p203
      %p205 = scmp.ne.s32.totalorder %s191, %s192
      %p206 = scmp.eq.s32.totalorder %s30, 1
      %p207 = por %p205, %p206
      %p209 = scmp.ne.s32.totalorder %s192, %s208
      %p210 = scmp.eq.s32.totalorder %s30, 0
      %p211 = por %p209, %p210
      %s212 = ssub.s32 %s31, %s43
      %s213 = ssub.s32 %s32, %s39
      %s214 = sor.u32 %s212, %s213
      %p215 = scmp.eq.s32.totalorder %s214, 0
      %s217 = sadd.s32 %s216, 1
      %s218 = scalar_select %p215, %s216, %s217
      %p221 = pneg %p215
      %p222 = scmp.eq.s32.totalorder %s24, 1
      %p223 = por %p221, %p222
      %p224 = scmp.ne.s32.totalorder %s216, %s219
      %p225 = scmp.eq.s32.totalorder %s24, 0
      %p226 = por %p224, %p225
      %p227 = scmp.ne.s32.totalorder %s216, %s219
      %p228 = scmp.eq.s32.totalorder %s29, 1
      %p229 = por %p227, %p228
      %p230 = scmp.ne.s32.totalorder %s219, %s220
      %p231 = scmp.eq.s32.totalorder %s29, 0
      %p232 = por %p230, %p231
      %p233 = scmp.ne.s32.totalorder %s219, %s220
      %p234 = scmp.eq.s32.totalorder %s30, 1
      %p235 = por %p233, %p234
      %p237 = scmp.ne.s32.totalorder %s220, %s236
      %p238 = scmp.eq.s32.totalorder %s30, 0
      %p239 = por %p237, %p238
      %p240 = scmp.le.s32.totalorder 1, %s24
      %p241 = scmp.lt.s32.totalorder %s24, 3
      %p242 = pnand %p240, %p241
      %p243 = pneg %p242
      // Predicated region
      $region9: #{tpu_custom_call.1} parent=5 // pred_check
        _
      $region10: #{tpu_custom_call.1} parent=5 // pred_check_branch
        %245 = sbr.rel (%p242) target = $region12
      $region11: #{tpu_custom_call.1} parent=5 // pred_region
        %s246 = ssub.s32 %s24, 1
        // Predicated region
        $region13: #{tpu_custom_call.1} parent=11 // pred_check
          %p247 = pneg %p85
        $region14: #{tpu_custom_call.1} parent=11 // pred_check_branch
          %249 = sbr.rel (%p247) target = $region16
        $region15: #{tpu_custom_call.1} parent=11 // pred_region
          %251 = vsyncadd [#allocation6], 0
          %s252 = sshll.u32 %s1, 4
          %s253 = int_to_ptr.hbm [resolvable:$true] %s252
          %s254 = sshll.u32 [#allocation5], 4
          %s255 = int_to_ptr.vmem [resolvable:$true] %s254
          %260 = dma.hbm_to_vmem [thread:$0]  %s253, 3072, %s255, [#allocation6], 192, 192, 12
        $region16: #{tpu_custom_call.1} parent=11 // pred_fallthru
          _
        // Predicated region
        $region17: #{tpu_custom_call.1} parent=11 // pred_check
          %p261 = pneg %p106
        $region18: #{tpu_custom_call.1} parent=11 // pred_check_branch
          %263 = sbr.rel (%p261) target = $region20
        $region19: #{tpu_custom_call.1} parent=11 // pred_region
          %265 = vsyncadd [#allocation6], 0
          %s267 = sshll.u32 %s2, 4
          %s268 = int_to_ptr.hbm [resolvable:$true] %s267
          %s269 = sshll.u32 [#allocation7], 4
          %s270 = int_to_ptr.vmem [resolvable:$true] %s269
          %272 = dma.hbm_to_vmem [thread:$0]  %s268, 48, %s270, [#allocation6]
        $region20: #{tpu_custom_call.1} parent=11 // pred_fallthru
          _
        // Predicated region
        $region21: #{tpu_custom_call.1} parent=11 // pred_check
          %p273 = pneg %p127
        $region22: #{tpu_custom_call.1} parent=11 // pred_check_branch
          %275 = sbr.rel (%p273) target = $region24
        $region23: #{tpu_custom_call.1} parent=11 // pred_region
          _
        $region24: #{tpu_custom_call.1} parent=11 // pred_fallthru
          _
        // Predicated region
        $region25: #{tpu_custom_call.1} parent=11 // pred_check
          %p276 = pneg %p148
        $region26: #{tpu_custom_call.1} parent=11 // pred_check_branch
          %278 = sbr.rel (%p276) target = $region28
        $region27: #{tpu_custom_call.1} parent=11 // pred_region
          _
        $region28: #{tpu_custom_call.1} parent=11 // pred_fallthru
          _
      $region12: #{tpu_custom_call.1} parent=5 // pred_fallthru
        _
      %p279 = scmp.lt.s32.totalorder %s24, 2
      // Predicated region
      $region29: #{tpu_custom_call.1} parent=5 // pred_check
        %p280 = pneg %p279
      $region30: #{tpu_custom_call.1} parent=5 // pred_check_branch
        %282 = sbr.rel (%p280) target = $region32
      $region31: #{tpu_custom_call.1} parent=5 // pred_region
        // Predicated region
        $region33: #{tpu_custom_call.1} parent=31 // pred_check
          %p283 = pneg %p58
        $region34: #{tpu_custom_call.1} parent=31 // pred_check_branch
          %285 = sbr.rel (%p283) target = $region36
        $region35: #{tpu_custom_call.1} parent=31 // pred_region
          %s286 = sand.u32 %s48, 1
          %s287 = scalar_lea.sflag [#allocation3], %s286
          %s288 = sand.u32 %s48, 1
          %s289 = smul.addr %s288, 16
          %s290 = scalar_lea.vmem [#allocation2], %s289
          %s291 = smul.u32 2, %s32
          %293 = vsyncadd %s287, 0
          %s294 = smul.addr %s31, 2
          %s295 = sadd.s32 %s291, %s294
          %s296 = smul.addr %s295, 8
          %s297 = scalar_lea.hbm %s0, %s296
          %s298 = sshll.u32 %s297, 4
          %s299 = int_to_ptr.hbm [resolvable:$true] %s298
          %s300 = sshll.u32 %s290, 4
          %s301 = int_to_ptr.vmem [resolvable:$true] %s300
          %306 = dma.hbm_to_vmem [thread:$0]  %s299, 256, %s301, %s287, 128, 128, 8
        $region36: #{tpu_custom_call.1} parent=31 // pred_fallthru
          _
      $region32: #{tpu_custom_call.1} parent=5 // pred_fallthru
        _
      %p307 = scmp.le.s32.totalorder 1, %s24
      %p308 = scmp.lt.s32.totalorder %s24, 3
      %p309 = pnand %p307, %p308
      %p310 = pneg %p309
      // Predicated region
      $region37: #{tpu_custom_call.1} parent=5 // pred_check
        _
      $region38: #{tpu_custom_call.1} parent=5 // pred_check_branch
        %312 = sbr.rel (%p309) target = $region40
      $region39: #{tpu_custom_call.1} parent=5 // pred_region
        %s313 = ssub.s32 %s24, 1
        %s314 = sand.u32 %s51, 1
        %s315 = scalar_lea.sflag [#allocation3], %s314
        %s316 = sand.u32 %s51, 1
        %s317 = smul.addr %s316, 16
        %s318 = scalar_lea.vmem [#allocation2], %s317
        // Predicated region
        $region41: #{tpu_custom_call.1} parent=39 // pred_check
          %p319 = pneg %p64
        $region42: #{tpu_custom_call.1} parent=39 // pred_check_branch
          %321 = sbr.rel (%p319) target = $region44
        $region43: #{tpu_custom_call.1} parent=39 // pred_region
          %323 = dma.done %s315, 256
        $region44: #{tpu_custom_call.1} parent=39 // pred_fallthru
          _
        // Predicated region
        $region45: #{tpu_custom_call.1} parent=39 // pred_check
          %p324 = pneg %p85
        $region46: #{tpu_custom_call.1} parent=39 // pred_check_branch
          %326 = sbr.rel (%p324) target = $region48
        $region47: #{tpu_custom_call.1} parent=39 // pred_region
          %328 = dma.done [#allocation6], 3072
        $region48: #{tpu_custom_call.1} parent=39 // pred_fallthru
          _
        // Predicated region
        $region49: #{tpu_custom_call.1} parent=39 // pred_check
          %p329 = pneg %p106
        $region50: #{tpu_custom_call.1} parent=39 // pred_check_branch
          %331 = sbr.rel (%p329) target = $region52
        $region51: #{tpu_custom_call.1} parent=39 // pred_region
          %333 = dma.done [#allocation6], 48
        $region52: #{tpu_custom_call.1} parent=39 // pred_fallthru
          _
        %s334 = sand.u32 %s51, 1
        %s335 = scalar_lea.sflag [#allocation3], %s334
        %s336 = sand.u32 %s51, 1
        %s337 = smul.addr %s336, 16
        %s338 = scalar_lea.vmem [#allocation2], %s337
        %p339 = pneg %p64
        %p340 = pneg %p61
        %p341 = pneg %p85
        %p342 = pneg %p82
        %p343 = pneg %p106
        %p344 = pneg %p103
        %p345 = pneg %p127
        %p346 = pneg %p124
        %p347 = pneg %p148
        %p348 = pneg %p145
        %p349 = pneg %p176
        %p350 = pneg %p173
        %s351 = sand.u32 %s163, 1
        %s352 = scalar_lea.sflag [#allocation4], %s351
        %s353 = sand.u32 %s163, 1
        %s354 = smul.addr %s353, 8
        %s355 = scalar_lea.vmem [#allocation8], %s354
        %p356 = pneg %p204
        %p357 = pneg %p201
        %s358 = sand.u32 %s29, 1
        %s359 = scalar_lea.sflag [#allocation10], %s358
        %s360 = sand.u32 %s191, 1
        %s361 = smul.addr %s360, 8
        %s362 = scalar_lea.vmem [#allocation9], %s361
        %p363 = pneg %p232
        %p364 = pneg %p229
        %s365 = sand.u32 %s29, 1
        %s366 = scalar_lea.sflag [#allocation10], %s365
        %s367 = sand.u32 %s219, 1
        %s368 = smul.addr %s367, 8
        %s369 = scalar_lea.vmem [#allocation11], %s368
        %s370 = smul.u32 2, %s34
        %s371 = smul.u32 2, %s34
        %s372 = smul.u32 2, %s34
        %s373 = smul.u32 2, %s34
        %v374 = vld [vmem:[%s318] sm:$0xff]
        %v375 = vld [vmem:[%s318 + $0x8] sm:$0xff]
        %v376 = vld [vmem:[%s3] sm:$0x1]
        %v377 = vld [vmem:[%s4] sm:$0x1]
        %378 = vadd.xlane.f32.xlu0 %v374
        %v379 = vpop.xlane.xlu0 %378
        %380 = vadd.xlane.f32.xlu0 %v375
        %v381 = vpop.xlane.xlu0 %380
        %v382 = vrcp.pop 128.0
        %v383 = vmul.f32 128.0, %v382
        %v384 = vsub.f32 1.0, %v383
        %v385 = vmul.f32 %v382, %v384
        %v386 = vadd.f32 %v382, %v385
        %vm387 = vweird.f32 %v382
        %v388 = vsel %vm387, %v382, %v386
        %v389 = vmul.f32 %v379, %v388
        %v390 = vmul.f32 %v381, %v388
        %v391 = vsub.f32 %v374, %v389
        %v392 = vsub.f32 %v375, %v390
        %v393 = vmul.f32 %v391, %v391
        %v394 = vmul.f32 %v392, %v392
        %395 = vadd.xlane.f32.xlu0 %v393
        %v396 = vpop.xlane.xlu0 %395
        %397 = vadd.xlane.f32.xlu0 %v394
        %v398 = vpop.xlane.xlu0 %397
        %v399 = vmul.f32 %v396, %v388
        %v400 = vmul.f32 %v398, %v388
        %v401 = vadd.f32 %v399, 1e-05
        %v402 = vadd.f32 %v400, 1e-05
        %v403 = vrsqrt.pop %v401
        %v404 = vmul.f32 %v403, %v401
        %v405 = vmul.f32 %v404, %v403
        %v406 = vmul.f32 0.5, %v405
        %v407 = vsub.f32 1.5, %v406
        %v408 = vmul.f32 %v403, %v407
        %vm409 = vweird.f32 %v401
        %vm410 = vweird.f32 %v403
        %vm411 = vmor %vm409, %vm410
        %v412 = vsel %vm411, %v403, %v408
        %v413 = vrsqrt.pop %v402
        %v414 = vmul.f32 %v413, %v402
        %v415 = vmul.f32 %v414, %v413
        %v416 = vmul.f32 0.5, %v415
        %v417 = vsub.f32 1.5, %v416
        %v418 = vmul.f32 %v413, %v417
        %vm419 = vweird.f32 %v402
        %vm420 = vweird.f32 %v413
        %vm421 = vmor %vm419, %vm420
        %v422 = vsel %vm421, %v413, %v418
        %v423 = vmul.f32 %v391, %v412
        %v424 = vmul.f32 %v392, %v422
        %v426 = vperm.slane %v376, 0
        %v428 = vmul.f32 %v423, %v426
        %v429 = vmul.f32 %v424, %v426
        %v431 = vperm.slane %v377, 0
        %v433 = vadd.f32 %v428, %v431
        %v434 = vadd.f32 %v429, %v431
        %v435 = vpack.c.bf16 %v434, %v433
        %v436 = vld [vmem:[#allocation5] sm:$0xff]
        %v437 = vld [vmem:[#allocation5 + $0x8] sm:$0xf]
        %v438 = vld [vmem:[#allocation5 + $0xc] sm:$0xff]
        %v439 = vld [vmem:[#allocation5 + $0x14] sm:$0xf]
        %v440 = vld [vmem:[#allocation5 + $0x18] sm:$0xff]
        %v441 = vld [vmem:[#allocation5 + $0x20] sm:$0xf]
        %v442 = vld [vmem:[#allocation5 + $0x24] sm:$0xff]
        %v443 = vld [vmem:[#allocation5 + $0x2c] sm:$0xf]
        %v444 = vld [vmem:[#allocation5 + $0x30] sm:$0xff]
        %v445 = vld [vmem:[#allocation5 + $0x38] sm:$0xf]
        %v446 = vld [vmem:[#allocation5 + $0x3c] sm:$0xff]
        %v447 = vld [vmem:[#allocation5 + $0x44] sm:$0xf]
        %v448 = vld [vmem:[#allocation5 + $0x48] sm:$0xff]
        %v449 = vld [vmem:[#allocation5 + $0x50] sm:$0xf]
        %v450 = vld [vmem:[#allocation5 + $0x54] sm:$0xff]
        %v451 = vld [vmem:[#allocation5 + $0x5c] sm:$0xf]
        %v452 = vld [vmem:[#allocation5 + $0x60] sm:$0xff]
        %v453 = vld [vmem:[#allocation5 + $0x68] sm:$0xf]
        %v454 = vld [vmem:[#allocation5 + $0x6c] sm:$0xff]
        %v455 = vld [vmem:[#allocation5 + $0x74] sm:$0xf]
        %v456 = vld [vmem:[#allocation5 + $0x78] sm:$0xff]
        %v457 = vld [vmem:[#allocation5 + $0x80] sm:$0xf]
        %v458 = vld [vmem:[#allocation5 + $0x84] sm:$0xff]
        %v459 = vld [vmem:[#allocation5 + $0x8c] sm:$0xf]
        %v460 = vld [vmem:[#allocation5 + $0x90] sm:$0xff]
        %v461 = vld [vmem:[#allocation5 + $0x98] sm:$0xf]
        %v462 = vld [vmem:[#allocation5 + $0x9c] sm:$0xff]
        %v463 = vld [vmem:[#allocation5 + $0xa4] sm:$0xf]
        %v464 = vld [vmem:[#allocation5 + $0xa8] sm:$0xff]
        %v465 = vld [vmem:[#allocation5 + $0xb0] sm:$0xf]
        %v466 = vld [vmem:[#allocation5 + $0xb4] sm:$0xff]
        %v467 = vld [vmem:[#allocation5 + $0xbc] sm:$0xf]
        %v468 = vld [vmem:[#allocation7] sm:$0x7]
        %v470 = vperm.slane %v468, 0
        %v471 = vperm.slane %v468, 1
        %v472 = vperm.slane %v468, 2
        %v508 = vunpack.c.l.b16 %v436
        %v509 = vunpack.c.h.b16 %v436
        %v510 = vunpack.c.l.b16 %v437
        %v511 = vunpack.c.l.b16 %v438
        %v512 = vunpack.c.h.b16 %v438
        %v513 = vunpack.c.l.b16 %v439
        %v514 = vunpack.c.l.b16 %v440
        %v515 = vunpack.c.h.b16 %v440
        %v516 = vunpack.c.l.b16 %v441
        %v517 = vunpack.c.l.b16 %v442
        %v518 = vunpack.c.h.b16 %v442
        %v519 = vunpack.c.l.b16 %v443
        %v520 = vunpack.c.l.b16 %v444
        %v521 = vunpack.c.h.b16 %v444
        %v522 = vunpack.c.l.b16 %v445
        %v523 = vunpack.c.l.b16 %v446
        %v524 = vunpack.c.h.b16 %v446
        %v525 = vunpack.c.l.b16 %v447
        %v526 = vunpack.c.l.b16 %v448
        %v527 = vunpack.c.h.b16 %v448
        %v528 = vunpack.c.l.b16 %v449
        %v529 = vunpack.c.l.b16 %v450
        %v530 = vunpack.c.h.b16 %v450
        %v531 = vunpack.c.l.b16 %v451
        %v532 = vunpack.c.l.b16 %v452
        %v533 = vunpack.c.h.b16 %v452
        %v534 = vunpack.c.l.b16 %v453
        %v535 = vunpack.c.l.b16 %v454
        %v536 = vunpack.c.h.b16 %v454
        %v537 = vunpack.c.l.b16 %v455
        %v538 = vunpack.c.l.b16 %v456
        %v539 = vunpack.c.h.b16 %v456
        %v540 = vunpack.c.l.b16 %v457
        %v541 = vunpack.c.l.b16 %v458
        %v542 = vunpack.c.h.b16 %v458
        %v543 = vunpack.c.l.b16 %v459
        %v544 = vunpack.c.l.b16 %v460
        %v545 = vunpack.c.h.b16 %v460
        %v546 = vunpack.c.l.b16 %v461
        %v547 = vunpack.c.l.b16 %v462
        %v548 = vunpack.c.h.b16 %v462
        %v549 = vunpack.c.l.b16 %v463
        %v550 = vunpack.c.l.b16 %v464
        %v551 = vunpack.c.h.b16 %v464
        %v552 = vunpack.c.l.b16 %v465
        %v553 = vunpack.c.l.b16 %v466
        %v554 = vunpack.c.h.b16 %v466
        %v555 = vunpack.c.l.b16 %v467
        %v556 = vpack.c.b16 %v511, %v508
        %v557 = vpack.c.b16 %v512, %v509
        %v558 = vpack.c.b16 %v513, %v510
        %v559 = vpack.c.b16 %v517, %v514
        %v560 = vpack.c.b16 %v518, %v515
        %v561 = vpack.c.b16 %v519, %v516
        %v562 = vpack.c.b16 %v523, %v520
        %v563 = vpack.c.b16 %v524, %v521
        %v564 = vpack.c.b16 %v525, %v522
        %v565 = vpack.c.b16 %v529, %v526
        %v566 = vpack.c.b16 %v530, %v527
        %v567 = vpack.c.b16 %v531, %v528
        %v568 = vpack.c.b16 %v535, %v532
        %v569 = vpack.c.b16 %v536, %v533
        %v570 = vpack.c.b16 %v537, %v534
        %v571 = vpack.c.b16 %v541, %v538
        %v572 = vpack.c.b16 %v542, %v539
        %v573 = vpack.c.b16 %v543, %v540
        %v574 = vpack.c.b16 %v547, %v544
        %v575 = vpack.c.b16 %v548, %v545
        %v576 = vpack.c.b16 %v549, %v546
        %v577 = vpack.c.b16 %v553, %v550
        %v578 = vpack.c.b16 %v554, %v551
        %v579 = vpack.c.b16 %v555, %v552
        %604 = vmatpush.bf16.msra.mxu0 %v577
        %605 = vmatpush.bf16.msra.mxu0 %v574
        %606 = vmatpush.bf16.msra.mxu0 %v571
        %607 = vmatpush.bf16.msra.mxu0 %v568
        %608 = vmatpush.bf16.msra.mxu0 %v565
        %609 = vmatpush.bf16.msra.mxu0 %v562
        %610 = vmatpush.bf16.msra.mxu0 %v559
        %611 = vmatpush.bf16.msra.mxu0 %v556
        %612 = vmatmul.bf16.gmra.mxu0 %v435
        %v613 = vpop.f32.mrf.mxu0
        %v614 = vadd.f32 %v470, %v613
        %v615 = vpop.f32.mrf.mxu0
        %v616 = vadd.f32 %v470, %v615
        %617 = vdwg.mxu0
        %618 = vmatpush.bf16.msra.mxu0 %v578
        %619 = vmatpush.bf16.msra.mxu0 %v575
        %620 = vmatpush.bf16.msra.mxu0 %v572
        %621 = vmatpush.bf16.msra.mxu0 %v569
        %622 = vmatpush.bf16.msra.mxu0 %v566
        %623 = vmatpush.bf16.msra.mxu0 %v563
        %624 = vmatpush.bf16.msra.mxu0 %v560
        %625 = vmatpush.bf16.msra.mxu0 %v557
        %626 = vmatmul.bf16.gmra.mxu0 %v435
        %v627 = vpop.f32.mrf.mxu0
        %v628 = vadd.f32 %v471, %v627
        %v629 = vpop.f32.mrf.mxu0
        %v630 = vadd.f32 %v471, %v629
        %631 = vdwg.mxu0
        %632 = vmatpush.bf16.msra.mxu0 %v579
        %633 = vmatpush.bf16.msra.mxu0 %v576
        %634 = vmatpush.bf16.msra.mxu0 %v573
        %635 = vmatpush.bf16.msra.mxu0 %v570
        %636 = vmatpush.bf16.msra.mxu0 %v567
        %637 = vmatpush.bf16.msra.mxu0 %v564
        %638 = vmatpush.bf16.msra.mxu0 %v561
        %639 = vmatpush.bf16.msra.mxu0 %v558
        %640 = vmatmul.bf16.gmra.mxu0 %v435
        %v641 = vpop.f32.mrf.mxu0
        %v642 = vadd.f32 %v472, %v641
        %v643 = vpop.f32.mrf.mxu0
        %v644 = vadd.f32 %v472, %v643
        %645 = vdwg.mxu0
        %v646 = vpack.c.bf16 %v614, %v614
        %v647 = vpack.c.bf16 %v616, %v616
        %648 = vst [vmem:[%s355] sm:$0xf] %v646
        %649 = vst [vmem:[%s355 + $0x4] sm:$0xf] %v647
        %v650 = vmul.f32 %v628, 0.17677669
        %v651 = vmul.f32 %v630, 0.17677669
        %v652 = vpack.c.bf16 %v650, %v650
        %v653 = vpack.c.bf16 %v651, %v651
        %654 = vst [vmem:[%s362] sm:$0xf] %v652
        %655 = vst [vmem:[%s362 + $0x4] sm:$0xf] %v653
        %v656 = vpack.c.bf16 %v642, %v642
        %v657 = vpack.c.bf16 %v644, %v644
        %658 = vst [vmem:[%s369] sm:$0xf] %v656
        %659 = vst [vmem:[%s369 + $0x4] sm:$0xf] %v657
        %s660 = sand.u32 %s163, 1
        %s661 = scalar_lea.sflag [#allocation4], %s660
        %s662 = sand.u32 %s163, 1
        %s663 = smul.addr %s662, 8
        %s664 = scalar_lea.vmem [#allocation8], %s663
        %s665 = sand.u32 %s29, 1
        %s666 = scalar_lea.sflag [#allocation10], %s665
        %s667 = sand.u32 %s191, 1
        %s668 = smul.addr %s667, 8
        %s669 = scalar_lea.vmem [#allocation9], %s668
        %s670 = sand.u32 %s29, 1
        %s671 = scalar_lea.sflag [#allocation10], %s670
        %s672 = sand.u32 %s219, 1
        %s673 = smul.addr %s672, 8
        %s674 = scalar_lea.vmem [#allocation11], %s673
        // Predicated region
        $region53: #{tpu_custom_call.1} parent=39 // pred_check
          %p675 = pneg %p173
        $region54: #{tpu_custom_call.1} parent=39 // pred_check_branch
          %677 = sbr.rel (%p675) target = $region56
        $region55: #{tpu_custom_call.1} parent=39 // pred_region
          %s678 = smul.u32 2, %s34
          %680 = vsyncadd %s661, 0
          %s681 = smul.addr %s33, 2
          %s682 = sadd.s32 %s678, %s681
          %s683 = smul.addr %s682, 4
          %s684 = scalar_lea.hbm %s5, %s683
          %s685 = sshll.u32 %s664, 4
          %s686 = int_to_ptr.vmem [resolvable:$true] %s685
          %s687 = sshll.u32 %s684, 4
          %s688 = int_to_ptr.hbm [resolvable:$true] %s687
          %693 = dma.vmem_to_hbm [thread:$0]  %s686, 128, %s688, %s661, 64, 64, 4
        $region56: #{tpu_custom_call.1} parent=39 // pred_fallthru
          _
        // Predicated region
        $region57: #{tpu_custom_call.1} parent=39 // pred_check
          %p694 = pneg %p201
        $region58: #{tpu_custom_call.1} parent=39 // pred_check_branch
          %696 = sbr.rel (%p694) target = $region60
        $region59: #{tpu_custom_call.1} parent=39 // pred_region
          %s697 = smul.u32 2, %s34
          %699 = vsyncadd %s666, 0
          %s700 = smul.addr %s33, 2
          %s701 = sadd.s32 %s697, %s700
          %s702 = smul.addr %s701, 4
          %s703 = scalar_lea.hbm %s6, %s702
          %s704 = sshll.u32 %s669, 4
          %s705 = int_to_ptr.vmem [resolvable:$true] %s704
          %s706 = sshll.u32 %s703, 4
          %s707 = int_to_ptr.hbm [resolvable:$true] %s706
          %712 = dma.vmem_to_hbm [thread:$0]  %s705, 128, %s707, %s666, 64, 64, 4
        $region60: #{tpu_custom_call.1} parent=39 // pred_fallthru
          _
        // Predicated region
        $region61: #{tpu_custom_call.1} parent=39 // pred_check
          %p713 = pneg %p229
        $region62: #{tpu_custom_call.1} parent=39 // pred_check_branch
          %715 = sbr.rel (%p713) target = $region64
        $region63: #{tpu_custom_call.1} parent=39 // pred_region
          %s716 = smul.u32 2, %s34
          %718 = vsyncadd %s671, 0
          %s719 = smul.addr %s33, 2
          %s720 = sadd.s32 %s716, %s719
          %s721 = smul.addr %s720, 4
          %s722 = scalar_lea.hbm %s7, %s721
          %s723 = sshll.u32 %s674, 4
          %s724 = int_to_ptr.vmem [resolvable:$true] %s723
          %s725 = sshll.u32 %s722, 4
          %s726 = int_to_ptr.hbm [resolvable:$true] %s725
          %731 = dma.vmem_to_hbm [thread:$0]  %s724, 128, %s726, %s671, 64, 64, 4
        $region64: #{tpu_custom_call.1} parent=39 // pred_fallthru
          _
      $region40: #{tpu_custom_call.1} parent=5 // pred_fallthru
        _
      %p732 = scmp.le.s32.totalorder 2, %s24
      // Predicated region
      $region65: #{tpu_custom_call.1} parent=5 // pred_check
        %p733 = pneg %p732
      $region66: #{tpu_custom_call.1} parent=5 // pred_check_branch
        %735 = sbr.rel (%p733) target = $region68
      $region67: #{tpu_custom_call.1} parent=5 // pred_region
        %s736 = ssub.s32 %s24, 2
        // Predicated region
        $region69: #{tpu_custom_call.1} parent=67 // pred_check
          %p737 = pneg %p179
        $region70: #{tpu_custom_call.1} parent=67 // pred_check_branch
          %739 = sbr.rel (%p737) target = $region72
        $region71: #{tpu_custom_call.1} parent=67 // pred_region
          %s740 = sand.u32 %s164, 1
          %s741 = scalar_lea.sflag [#allocation4], %s740
          %s742 = sand.u32 %s164, 1
          %s743 = smul.addr %s742, 8
          %s744 = scalar_lea.vmem [#allocation8], %s743
          %746 = dma.done %s741, 128
        $region72: #{tpu_custom_call.1} parent=67 // pred_fallthru
          _
        // Predicated region
        $region73: #{tpu_custom_call.1} parent=67 // pred_check
          %p747 = pneg %p207
        $region74: #{tpu_custom_call.1} parent=67 // pred_check_branch
          %749 = sbr.rel (%p747) target = $region76
        $region75: #{tpu_custom_call.1} parent=67 // pred_region
          %s750 = sand.u32 %s30, 1
          %s751 = scalar_lea.sflag [#allocation10], %s750
          %s752 = sand.u32 %s192, 1
          %s753 = smul.addr %s752, 8
          %s754 = scalar_lea.vmem [#allocation9], %s753
          %756 = dma.done %s751, 128
        $region76: #{tpu_custom_call.1} parent=67 // pred_fallthru
          _
        // Predicated region
        $region77: #{tpu_custom_call.1} parent=67 // pred_check
          %p757 = pneg %p235
        $region78: #{tpu_custom_call.1} parent=67 // pred_check_branch
          %759 = sbr.rel (%p757) target = $region80
        $region79: #{tpu_custom_call.1} parent=67 // pred_region
          %s760 = sand.u32 %s30, 1
          %s761 = scalar_lea.sflag [#allocation10], %s760
          %s762 = sand.u32 %s220, 1
          %s763 = smul.addr %s762, 8
          %s764 = scalar_lea.vmem [#allocation11], %s763
          %766 = dma.done %s761, 128
        $region80: #{tpu_custom_call.1} parent=67 // pred_fallthru
          _
      $region68: #{tpu_custom_call.1} parent=5 // pred_fallthru
        _
    $region6: #{tpu_custom_call.1} parent=1 // loop_footer
      %s28 = sadd.s32 1, %s24
    $region7: #{tpu_custom_call.1} parent=1 // loop_footer_branch
      %23 = sbr.rel target = $region3
    $region8: #{tpu_custom_call.1} parent=1 // loop_exit
      _
    %767 = vsyncpa [#allocation3], 1
    %s768 = scalar_lea.sflag [#allocation3], 1
    %769 = vsyncpa %s768, 1
    %770 = vsyncpa [#allocation6], 1
    %771 = vsyncpa [#allocation4], 1
    %s772 = scalar_lea.sflag [#allocation4], 1
    %773 = vsyncpa %s772, 1
    %774 = vsyncpa [#allocation10], 1
    %s775 = scalar_lea.sflag [#allocation10], 1
    %776 = vsyncpa %s775, 1

</llo_original>
